<compile_context>
chip_gen: v5e
topology: v5e:2x2
jax: 0.10.0
libtpu: 0.0.40
codegen_flags: <defaults>
</compile_context>

<pallas_src>
import jax
import jax.numpy as jnp
from jax.experimental import pallas as pl
from jax.experimental.pallas import tpu as pltpu


def _round_up(x, m):
    return ((x + m - 1) // m) * m


def qnetwork_kernel(x_ref, w1_ref, b1_ref, w2_ref, b2_ref, w3_ref, b3_ref, out_ref):
    # x_ref: (S, BT) bf16 tile of the transposed input; weights bf16, biases f32.
    x = x_ref[...]

    # fc1 + ReLU:  (H1, S) @ (S, BT) -> (H1, BT), f32 accumulation
    h1 = jnp.dot(w1_ref[...], x, preferred_element_type=jnp.float32)
    h1 = jnp.maximum(h1 + b1_ref[...], 0.0)

    # fc2 + ReLU:  (H2, H1) @ (H1, BT) -> (H2, BT)
    h2 = jnp.dot(w2_ref[...], h1.astype(jnp.bfloat16),
                 preferred_element_type=jnp.float32)
    h2 = jnp.maximum(h2 + b2_ref[...], 0.0)

    # fc3 (no activation):  (A, H2) @ (H2, BT) -> (A, BT)
    h3 = jnp.dot(w3_ref[...], h2.astype(jnp.bfloat16),
                 preferred_element_type=jnp.float32)
    out_ref[...] = (h3 + b3_ref[...]).astype(out_ref.dtype)


def qnetwork_forward(x, params, *, batch_tile=512):
    """x: (B, state_size) float32. params: PyTorch-layout weights/biases.

    Returns (B, action_size) float32 Q-values.
    """
    w1, b1 = params["w1"], params["b1"]   # (64, S), (64,)
    w2, b2 = params["w2"], params["b2"]   # (32, 64), (32,)
    w3, b3 = params["w3"], params["b3"]   # (A, 32), (A,)

    B, S = x.shape
    H1 = w1.shape[0]
    H2 = w2.shape[0]
    A = w3.shape[0]

    # Lane-dense, MXU-friendly batch tile: multiple of 256, capped at `batch_tile`.
    bt = min(batch_tile, _round_up(B, 256))
    b_pad = _round_up(B, bt)
    n_tiles = pl.cdiv(b_pad, bt)

    # Transpose to (features, batch), pad batch to the tile boundary, cast to bf16.
    x_t = jnp.pad(x.T, ((0, 0), (0, b_pad - B))).astype(jnp.bfloat16)   # (S, b_pad)
    w1b = w1.astype(jnp.bfloat16)
    w2b = w2.astype(jnp.bfloat16)
    w3b = w3.astype(jnp.bfloat16)
    b1c = b1.reshape(H1, 1).astype(jnp.float32)
    b2c = b2.reshape(H2, 1).astype(jnp.float32)
    b3c = b3.reshape(A, 1).astype(jnp.float32)

    resident = lambda shape: pl.BlockSpec(shape, lambda i: (0, 0))

    out_t = pl.pallas_call(
        qnetwork_kernel,
        out_shape=jax.ShapeDtypeStruct((A, b_pad), jnp.float32),
        grid=(n_tiles,),
        in_specs=[
            pl.BlockSpec((S, bt), lambda i: (0, i)),   # streamed x tiles
            resident((H1, S)), resident((H1, 1)),      # fc1 weights/bias (VMEM-resident)
            resident((H2, H1)), resident((H2, 1)),     # fc2
            resident((A, H2)), resident((A, 1)),       # fc3
        ],
        out_specs=pl.BlockSpec((A, bt), lambda i: (0, i)),
        compiler_params=pltpu.CompilerParams(
            dimension_semantics=("parallel",),         # megacore split on v7x
        ),
    )(x_t, w1b, b1c, w2b, b2c, w3b, b3c)

    # Drop batch padding and return to (B, action_size) layout.
    return out_t[:, :B].T


def init_params(key, state_size, action_size, h1=64, h2=32):
    """PyTorch nn.Linear-style init: uniform +/- 1/sqrt(fan_in); W is (out, in)."""
    ks = jax.random.split(key, 6)

    def lin(kw, kb, fan_in, fan_out):
        bound = 1.0 / jnp.sqrt(fan_in)
        w = jax.random.uniform(kw, (fan_out, fan_in), jnp.float32, -bound, bound)
        b = jax.random.uniform(kb, (fan_out,), jnp.float32, -bound, bound)
        return w, b

    w1, b1 = lin(ks[0], ks[1], state_size, h1)
    w2, b2 = lin(ks[2], ks[3], h1, h2)
    w3, b3 = lin(ks[4], ks[5], h2, action_size)
    return {"w1": w1, "b1": b1, "w2": w2, "b2": b2, "w3": w3, "b3": b3}


if __name__ == "__main__":
    key = jax.random.PRNGKey(0)
    state_size, action_size, batch = 8, 4, 8

    kp, kx = jax.random.split(key)
    params = init_params(kp, state_size, action_size)
    x = jax.random.normal(kx, (batch, state_size), jnp.float32)

    out = qnetwork_forward(x, params)
    out = jax.block_until_ready(out)

    # Reference in plain f32 JAX (kernel uses bf16 weights/activations on the MXU,
    # f32 accumulation -> small relative error is expected).
    ref = jnp.maximum(x @ params["w1"].T + params["b1"], 0.0)
    ref = jnp.maximum(ref @ params["w2"].T + params["b2"], 0.0)
    ref = ref @ params["w3"].T + params["b3"]

    assert out.shape == (batch, action_size)
    assert jnp.allclose(out, ref, atol=5e-2, rtol=5e-2), "mismatch vs reference"

    print("KERNEL_OK")
</pallas_src>

<mosaic_0001>
module attributes {stable_mosaic.version = 11 : i64} {
  func.func @qnetwork_kernel(%arg0: i32, %arg1: memref<8x256xbf16, #tpu.memory_space<vmem>>, %arg2: memref<64x8xbf16, #tpu.memory_space<vmem>>, %arg3: memref<64x1xf32, #tpu.memory_space<vmem>>, %arg4: memref<32x64xbf16, #tpu.memory_space<vmem>>, %arg5: memref<32x1xf32, #tpu.memory_space<vmem>>, %arg6: memref<4x32xbf16, #tpu.memory_space<vmem>>, %arg7: memref<4x1xf32, #tpu.memory_space<vmem>>, %arg8: memref<4x256xf32, #tpu.memory_space<vmem>>) attributes {dimension_semantics = [#tpu.dimension_semantics<parallel>], iteration_bounds = array<i64: 1>, scalar_prefetch = 0 : i64, scratch_operands = 0 : i64, tpu.core_type = #tpu.core_type<tc>, window_params = [{transform_indices = @transform_0, window_bounds = array<i64: 8, 256>}, {pipeline_mode = #tpu.pipeline_mode<synchronous>, transform_indices = @transform_1, window_bounds = array<i64: 64, 8>}, {pipeline_mode = #tpu.pipeline_mode<synchronous>, transform_indices = @transform_2, window_bounds = array<i64: 64, 1>}, {pipeline_mode = #tpu.pipeline_mode<synchronous>, transform_indices = @transform_3, window_bounds = array<i64: 32, 64>}, {pipeline_mode = #tpu.pipeline_mode<synchronous>, transform_indices = @transform_4, window_bounds = array<i64: 32, 1>}, {pipeline_mode = #tpu.pipeline_mode<synchronous>, transform_indices = @transform_5, window_bounds = array<i64: 4, 32>}, {pipeline_mode = #tpu.pipeline_mode<synchronous>, transform_indices = @transform_6, window_bounds = array<i64: 4, 1>}, {transform_indices = @transform_7, window_bounds = array<i64: 4, 256>}]} {
    %c0 = arith.constant 0 : index
    %c0_0 = arith.constant 0 : index
    %0 = vector.load %arg1[%c0, %c0_0] : memref<8x256xbf16, #tpu.memory_space<vmem>>, vector<8x256xbf16>
    %c0_1 = arith.constant 0 : index
    %c0_2 = arith.constant 0 : index
    %1 = vector.load %arg2[%c0_1, %c0_2] : memref<64x8xbf16, #tpu.memory_space<vmem>>, vector<64x8xbf16>
    %cst = arith.constant dense<0.000000e+00> : vector<64x256xf32>
    %2 = tpu.matmul %1, %0, %cst {dimension_numbers = #tpu.dot_dimension_numbers<[1], [0], [0], [1], [0, 0, 1, 1], [], []>} : vector<64x8xbf16>, vector<8x256xbf16>, vector<64x256xf32> -> vector<64x256xf32>
    %c0_3 = arith.constant 0 : index
    %c0_4 = arith.constant 0 : index
    %3 = vector.load %arg3[%c0_3, %c0_4] : memref<64x1xf32, #tpu.memory_space<vmem>>, vector<64x1xf32>
    %4 = vector.broadcast %3 : vector<64x1xf32> to vector<64x256xf32>
    %5 = arith.addf %2, %4 : vector<64x256xf32>
    %cst_5 = arith.constant 0.000000e+00 : f32
    %6 = vector.broadcast %cst_5 : f32 to vector<64x256xf32>
    %7 = arith.maximumf %5, %6 : vector<64x256xf32>
    %c0_6 = arith.constant 0 : index
    %c0_7 = arith.constant 0 : index
    %8 = vector.load %arg4[%c0_6, %c0_7] : memref<32x64xbf16, #tpu.memory_space<vmem>>, vector<32x64xbf16>
    %9 = arith.truncf %7 : vector<64x256xf32> to vector<64x256xbf16>
    %cst_8 = arith.constant dense<0.000000e+00> : vector<32x256xf32>
    %10 = tpu.matmul %8, %9, %cst_8 {dimension_numbers = #tpu.dot_dimension_numbers<[1], [0], [0], [1], [0, 0, 1, 1], [], []>} : vector<32x64xbf16>, vector<64x256xbf16>, vector<32x256xf32> -> vector<32x256xf32>
    %c0_9 = arith.constant 0 : index
    %c0_10 = arith.constant 0 : index
    %11 = vector.load %arg5[%c0_9, %c0_10] : memref<32x1xf32, #tpu.memory_space<vmem>>, vector<32x1xf32>
    %12 = vector.broadcast %11 : vector<32x1xf32> to vector<32x256xf32>
    %13 = arith.addf %10, %12 : vector<32x256xf32>
    %cst_11 = arith.constant 0.000000e+00 : f32
    %14 = vector.broadcast %cst_11 : f32 to vector<32x256xf32>
    %15 = arith.maximumf %13, %14 : vector<32x256xf32>
    %c0_12 = arith.constant 0 : index
    %c0_13 = arith.constant 0 : index
    %16 = vector.load %arg6[%c0_12, %c0_13] : memref<4x32xbf16, #tpu.memory_space<vmem>>, vector<4x32xbf16>
    %17 = arith.truncf %15 : vector<32x256xf32> to vector<32x256xbf16>
    %cst_14 = arith.constant dense<0.000000e+00> : vector<4x256xf32>
    %18 = tpu.matmul %16, %17, %cst_14 {dimension_numbers = #tpu.dot_dimension_numbers<[1], [0], [0], [1], [0, 0, 1, 1], [], []>} : vector<4x32xbf16>, vector<32x256xbf16>, vector<4x256xf32> -> vector<4x256xf32>
    %c0_15 = arith.constant 0 : index
    %c0_16 = arith.constant 0 : index
    %19 = vector.load %arg7[%c0_15, %c0_16] : memref<4x1xf32, #tpu.memory_space<vmem>>, vector<4x1xf32>
    %20 = vector.broadcast %19 : vector<4x1xf32> to vector<4x256xf32>
    %21 = arith.addf %18, %20 : vector<4x256xf32>
    %c0_17 = arith.constant 0 : index
    %c0_18 = arith.constant 0 : index
    %22 = vector.load %arg8[%c0_17, %c0_18] : memref<4x256xf32, #tpu.memory_space<vmem>>, vector<4x256xf32>
    tpu.vector_store %arg8[%c0_17, %c0_18], %21 {strides = array<i32>} : memref<4x256xf32, #tpu.memory_space<vmem>>, vector<4x256xf32>,
    return
  }
  func.func @transform_0(%arg0: i32) -> (i32, i32) {
    %c0_i32 = arith.constant 0 : i32
    %c0_i32_0 = arith.constant 0 : i32
    return %c0_i32, %arg0 : i32, i32
  }
  func.func @transform_1(%arg0: i32) -> (i32, i32) {
    %c0_i32 = arith.constant 0 : i32
    %c0_i32_0 = arith.constant 0 : i32
    %c0_i32_1 = arith.constant 0 : i32
    return %c0_i32, %c0_i32_0 : i32, i32
  }
  func.func @transform_2(%arg0: i32) -> (i32, i32) {
    %c0_i32 = arith.constant 0 : i32
    %c0_i32_0 = arith.constant 0 : i32
    %c0_i32_1 = arith.constant 0 : i32
    return %c0_i32, %c0_i32_0 : i32, i32
  }
  func.func @transform_3(%arg0: i32) -> (i32, i32) {
    %c0_i32 = arith.constant 0 : i32
    %c0_i32_0 = arith.constant 0 : i32
    %c0_i32_1 = arith.constant 0 : i32
    return %c0_i32, %c0_i32_0 : i32, i32
  }
  func.func @transform_4(%arg0: i32) -> (i32, i32) {
    %c0_i32 = arith.constant 0 : i32
    %c0_i32_0 = arith.constant 0 : i32
    %c0_i32_1 = arith.constant 0 : i32
    return %c0_i32, %c0_i32_0 : i32, i32
  }
  func.func @transform_5(%arg0: i32) -> (i32, i32) {
    %c0_i32 = arith.constant 0 : i32
    %c0_i32_0 = arith.constant 0 : i32
    %c0_i32_1 = arith.constant 0 : i32
    return %c0_i32, %c0_i32_0 : i32, i32
  }
  func.func @transform_6(%arg0: i32) -> (i32, i32) {
    %c0_i32 = arith.constant 0 : i32
    %c0_i32_0 = arith.constant 0 : i32
    %c0_i32_1 = arith.constant 0 : i32
    return %c0_i32, %c0_i32_0 : i32, i32
  }
  func.func @transform_7(%arg0: i32) -> (i32, i32) {
    %c0_i32 = arith.constant 0 : i32
    %c0_i32_0 = arith.constant 0 : i32
    return %c0_i32, %arg0 : i32, i32
  }
}

</mosaic_0001>

<llo_original>
// kernel: tpu_custom_call.1
$region0: #{tpu_custom_call.1}
  #allocation0 [shape = 'u32[]', space=smem, size = 0x4, offset = 0x4, fixed_abs, tag = 'smem constant byte address 0x4 - core index']
  #allocation1 [shape = 'u32[72,128]{1,0:T(1,128)}', space=vmem, size = 0x9000, scoped, tag = 'internal scratch']
  %s0 = inlined_call_operand.vmem [shape: bf16[8,256], index: 0, kind: input, shape index: {}]
  %s1 = inlined_call_operand.vmem [shape: bf16[64,8], index: 1, kind: input, shape index: {}]
  %s2 = inlined_call_operand.vmem [shape: f32[64,1], index: 2, kind: input, shape index: {}]
  %s3 = inlined_call_operand.vmem [shape: bf16[32,64], index: 3, kind: input, shape index: {}]
  %s4 = inlined_call_operand.vmem [shape: f32[32,1], index: 4, kind: input, shape index: {}]
  %s5 = inlined_call_operand.vmem [shape: bf16[4,32], index: 5, kind: input, shape index: {}]
  %s6 = inlined_call_operand.vmem [shape: f32[4,1], index: 6, kind: input, shape index: {}]
  %s7 = inlined_call_operand.hbm [shape: f32[4,256], index: 7, kind: output, shape index: {}]
  %s8 = sld [smem:[#allocation0]]
  $region38: #{tpu_custom_call.1} parent=0
    _
  %s10 = ssub.s32 1, %s8
  %s11 = scalar_select 0, %s10, %s8
  $region1: #{tpu_custom_call.1} parent=0
    #allocation2 [shape = 'u8[4096]{0}', space=vmem, size = 0x1000, scoped, tag = 'output window, operand 0, single buffered']
    #allocation3 [shape = 's32[1]{0}', space=sflag, size = 0x4, scoped, tag = 'scoped memory for tpu_custom_call.1']
    %12 = vsyncpa [#allocation3], 0
    // Predicated region
    $region2: #{tpu_custom_call.1} parent=1 // pred_check
      _
    $region3: #{tpu_custom_call.1} parent=1 // pred_check_branch
      %14 = sbr.rel (0) target = $region5
    $region4: #{tpu_custom_call.1} parent=1 // pred_region
      _
    $region5: #{tpu_custom_call.1} parent=1 // pred_fallthru
      _
    // Predicated region
    $region6: #{tpu_custom_call.1} parent=1 // pred_check
      _
    $region7: #{tpu_custom_call.1} parent=1 // pred_check_branch
      %16 = sbr.rel (0) target = $region9
    $region8: #{tpu_custom_call.1} parent=1 // pred_region
      _
    $region9: #{tpu_custom_call.1} parent=1 // pred_fallthru
      _
    // Predicated region
    $region10: #{tpu_custom_call.1} parent=1 // pred_check
      _
    $region11: #{tpu_custom_call.1} parent=1 // pred_check_branch
      %18 = sbr.rel (0) target = $region13
    $region12: #{tpu_custom_call.1} parent=1 // pred_region
      _
    $region13: #{tpu_custom_call.1} parent=1 // pred_fallthru
      _
    // Predicated region
    $region14: #{tpu_custom_call.1} parent=1 // pred_check
      _
    $region15: #{tpu_custom_call.1} parent=1 // pred_check_branch
      %20 = sbr.rel (0) target = $region17
    $region16: #{tpu_custom_call.1} parent=1 // pred_region
      _
    $region17: #{tpu_custom_call.1} parent=1 // pred_fallthru
      _
    // Predicated region
    $region18: #{tpu_custom_call.1} parent=1 // pred_check
      _
    $region19: #{tpu_custom_call.1} parent=1 // pred_check_branch
      %22 = sbr.rel (0) target = $region21
    $region20: #{tpu_custom_call.1} parent=1 // pred_region
      _
    $region21: #{tpu_custom_call.1} parent=1 // pred_fallthru
      _
    // Predicated region
    $region22: #{tpu_custom_call.1} parent=1 // pred_check
      _
    $region23: #{tpu_custom_call.1} parent=1 // pred_check_branch
      %24 = sbr.rel (0) target = $region25
    $region24: #{tpu_custom_call.1} parent=1 // pred_region
      _
    $region25: #{tpu_custom_call.1} parent=1 // pred_fallthru
      _
    // Predicated region
    $region26: #{tpu_custom_call.1} parent=1 // pred_check
      _
    $region27: #{tpu_custom_call.1} parent=1 // pred_check_branch
      %26 = sbr.rel (0) target = $region29
    $region28: #{tpu_custom_call.1} parent=1 // pred_region
      _
    $region29: #{tpu_custom_call.1} parent=1 // pred_fallthru
      _
    %v28 = vld [vmem:[%s0] sm:$0xff]
    %v29 = vld [vmem:[%s1] sm:$0xf]
    %v30 = vld [vmem:[%s1 + $0x4] sm:$0xf]
    %v31 = vld [vmem:[%s1 + $0x8] sm:$0xf]
    %v32 = vld [vmem:[%s1 + $0xc] sm:$0xf]
    %v33 = vld [vmem:[%s1 + $0x10] sm:$0xf]
    %v34 = vld [vmem:[%s1 + $0x14] sm:$0xf]
    %v35 = vld [vmem:[%s1 + $0x18] sm:$0xf]
    %v36 = vld [vmem:[%s1 + $0x1c] sm:$0xf]
    %v37 = vld [vmem:[%s2] sm:$0xff]
    %v38 = vld [vmem:[%s2 + $0x8] sm:$0xff]
    %v39 = vld [vmem:[%s2 + $0x10] sm:$0xff]
    %v40 = vld [vmem:[%s2 + $0x18] sm:$0xff]
    %v41 = vld [vmem:[%s2 + $0x20] sm:$0xff]
    %v42 = vld [vmem:[%s2 + $0x28] sm:$0xff]
    %v43 = vld [vmem:[%s2 + $0x30] sm:$0xff]
    %v44 = vld [vmem:[%s2 + $0x38] sm:$0xff]
    %46 = vset.pattern.permute.xlu0 0
    %47 = vperm.xlu0 %46, %v37
    %v48 = vpop.permute.xlu0 %47
    %51 = vset.pattern.permute.xlu0 0
    %52 = vperm.xlu0 %51, %v38
    %v53 = vpop.permute.xlu0 %52
    %56 = vset.pattern.permute.xlu0 0
    %57 = vperm.xlu0 %56, %v39
    %v58 = vpop.permute.xlu0 %57
    %61 = vset.pattern.permute.xlu0 0
    %62 = vperm.xlu0 %61, %v40
    %v63 = vpop.permute.xlu0 %62
    %66 = vset.pattern.permute.xlu0 0
    %67 = vperm.xlu0 %66, %v41
    %v68 = vpop.permute.xlu0 %67
    %71 = vset.pattern.permute.xlu0 0
    %72 = vperm.xlu0 %71, %v42
    %v73 = vpop.permute.xlu0 %72
    %76 = vset.pattern.permute.xlu0 0
    %77 = vperm.xlu0 %76, %v43
    %v78 = vpop.permute.xlu0 %77
    %81 = vset.pattern.permute.xlu0 0
    %82 = vperm.xlu0 %81, %v44
    %v83 = vpop.permute.xlu0 %82
    %v93 = vunpack.c.l.b16 %v29
    %v94 = vunpack.c.l.b16 %v30
    %v95 = vunpack.c.l.b16 %v31
    %v96 = vunpack.c.l.b16 %v32
    %v97 = vunpack.c.l.b16 %v33
    %v98 = vunpack.c.l.b16 %v34
    %v99 = vunpack.c.l.b16 %v35
    %v100 = vunpack.c.l.b16 %v36
    %v101 = vpack.c.b16 %v94, %v93
    %v102 = vpack.c.b16 %v96, %v95
    %v103 = vpack.c.b16 %v98, %v97
    %v104 = vpack.c.b16 %v100, %v99
    %v106 = vunpack.c.l.b16 %v28
    %v107 = vunpack.c.h.b16 %v28
    %v108 = vpack.c.b16 %v106, %v106
    %v109 = vpack.c.b16 %v107, %v107
    %vm110 = vcmask 64512
    %v112 = vsel %vm110, %v101, 0
    %v115 = vsel %vm110, %v102, 0
    %v118 = vsel %vm110, %v103, 0
    %v121 = vsel %vm110, %v104, 0
    %vm123 = vcmask 1043456
    %v125 = vsel %vm123, %v108, 0
    %v128 = vsel %vm123, %v109, 0
    %130 = vmatpush.bf16.msra.mxu0 0
    %131 = vmatpush.bf16.msra.mxu0 0
    %132 = vmatpush.bf16.msra.mxu0 0
    %133 = vmatpush.bf16.msra.mxu0 0
    %134 = vmatpush.bf16.msra.mxu0 0
    %135 = vmatpush.bf16.msra.mxu0 0
    %136 = vmatpush.bf16.msra.mxu0 0
    %137 = vmatpush.bf16.msra.mxu0 %v125
    %138 = vmatmul.bf16.gmra.mxu0 %v112
    %v139 = vpop.f32.mrf.mxu0
    %v140 = vadd.f32 %v48, %v139
    %v141 = vpop.f32.mrf.mxu0
    %v142 = vadd.f32 %v53, %v141
    %143 = vmatmul.bf16.gmra.mxu0 %v115
    %v144 = vpop.f32.mrf.mxu0
    %v145 = vadd.f32 %v58, %v144
    %v146 = vpop.f32.mrf.mxu0
    %v147 = vadd.f32 %v63, %v146
    %148 = vmatmul.bf16.gmra.mxu0 %v118
    %v149 = vpop.f32.mrf.mxu0
    %v150 = vadd.f32 %v68, %v149
    %v151 = vpop.f32.mrf.mxu0
    %v152 = vadd.f32 %v73, %v151
    %153 = vmatmul.bf16.gmra.mxu0 %v121
    %v154 = vpop.f32.mrf.mxu0
    %v155 = vadd.f32 %v78, %v154
    %v156 = vpop.f32.mrf.mxu0
    %v157 = vadd.f32 %v83, %v156
    %158 = vdwg.mxu0
    %159 = vmatpush.bf16.msra.mxu0 0
    %160 = vmatpush.bf16.msra.mxu0 0
    %161 = vmatpush.bf16.msra.mxu0 0
    %162 = vmatpush.bf16.msra.mxu0 0
    %163 = vmatpush.bf16.msra.mxu0 0
    %164 = vmatpush.bf16.msra.mxu0 0
    %165 = vmatpush.bf16.msra.mxu0 0
    %166 = vmatpush.bf16.msra.mxu0 %v128
    %167 = vmatmul.bf16.gmra.mxu0 %v112
    %v168 = vpop.f32.mrf.mxu0
    %v169 = vadd.f32 %v48, %v168
    %v170 = vpop.f32.mrf.mxu0
    %v171 = vadd.f32 %v53, %v170
    %172 = vmatmul.bf16.gmra.mxu0 %v115
    %v173 = vpop.f32.mrf.mxu0
    %v174 = vadd.f32 %v58, %v173
    %v175 = vpop.f32.mrf.mxu0
    %v176 = vadd.f32 %v63, %v175
    %177 = vmatmul.bf16.gmra.mxu0 %v118
    %v178 = vpop.f32.mrf.mxu0
    %v179 = vadd.f32 %v68, %v178
    %v180 = vpop.f32.mrf.mxu0
    %v181 = vadd.f32 %v73, %v180
    %182 = vmatmul.bf16.gmra.mxu0 %v121
    %v183 = vpop.f32.mrf.mxu0
    %v184 = vadd.f32 %v78, %v183
    %v185 = vpop.f32.mrf.mxu0
    %v186 = vadd.f32 %v83, %v185
    %187 = vdwg.mxu0
    %v188 = vmax.f32 %v140, 0.0
    %v189 = vmax.f32 %v169, 0.0
    %v190 = vmax.f32 %v142, 0.0
    %v191 = vmax.f32 %v171, 0.0
    %v192 = vmax.f32 %v145, 0.0
    %v193 = vmax.f32 %v174, 0.0
    %v194 = vmax.f32 %v147, 0.0
    %v195 = vmax.f32 %v176, 0.0
    %v196 = vmax.f32 %v150, 0.0
    %v197 = vmax.f32 %v179, 0.0
    %v198 = vmax.f32 %v152, 0.0
    %v199 = vmax.f32 %v181, 0.0
    %v200 = vmax.f32 %v155, 0.0
    %v201 = vmax.f32 %v184, 0.0
    %v202 = vmax.f32 %v157, 0.0
    %v203 = vmax.f32 %v186, 0.0
    %v204 = vld [vmem:[%s3] sm:$0xf]
    %v205 = vld [vmem:[%s3 + $0x4] sm:$0xf]
    %v206 = vld [vmem:[%s3 + $0x8] sm:$0xf]
    %v207 = vld [vmem:[%s3 + $0xc] sm:$0xf]
    %v208 = vpack.c.bf16 %v190, %v188
    %v209 = vpack.c.bf16 %v191, %v189
    %v210 = vpack.c.bf16 %v194, %v192
    %v211 = vpack.c.bf16 %v195, %v193
    %v212 = vpack.c.bf16 %v198, %v196
    %v213 = vpack.c.bf16 %v199, %v197
    %v214 = vpack.c.bf16 %v202, %v200
    %v215 = vpack.c.bf16 %v203, %v201
    %v216 = vld [vmem:[%s4] sm:$0xff]
    %v217 = vld [vmem:[%s4 + $0x8] sm:$0xff]
    %v218 = vld [vmem:[%s4 + $0x10] sm:$0xff]
    %v219 = vld [vmem:[%s4 + $0x18] sm:$0xff]
    %221 = vset.pattern.permute.xlu0 0
    %222 = vperm.xlu0 %221, %v216
    %v223 = vpop.permute.xlu0 %222
    %226 = vset.pattern.permute.xlu0 0
    %227 = vperm.xlu0 %226, %v217
    %v228 = vpop.permute.xlu0 %227
    %231 = vset.pattern.permute.xlu0 0
    %232 = vperm.xlu0 %231, %v218
    %v233 = vpop.permute.xlu0 %232
    %236 = vset.pattern.permute.xlu0 0
    %237 = vperm.xlu0 %236, %v219
    %v238 = vpop.permute.xlu0 %237
    %v244 = vunpack.c.l.b16 %v204
    %v245 = vunpack.c.l.b16 %v205
    %v246 = vunpack.c.l.b16 %v206
    %v247 = vunpack.c.l.b16 %v207
    %v248 = vpack.c.b16 %v245, %v244
    %v249 = vpack.c.b16 %v247, %v246
    %vm250 = vcmask 523264
    %v252 = vsel %vm250, %v248, 0
    %v255 = vsel %vm250, %v249, 0
    %257 = vmatpush.bf16.msra.mxu0 0
    %258 = vmatpush.bf16.msra.mxu0 0
    %259 = vmatpush.bf16.msra.mxu0 0
    %260 = vmatpush.bf16.msra.mxu0 0
    %261 = vmatpush.bf16.msra.mxu0 %v214
    %262 = vmatpush.bf16.msra.mxu0 %v212
    %263 = vmatpush.bf16.msra.mxu0 %v210
    %264 = vmatpush.bf16.msra.mxu0 %v208
    %265 = vmatmul.bf16.gmra.mxu0 %v252
    %v266 = vpop.f32.mrf.mxu0
    %v267 = vadd.f32 %v223, %v266
    %v268 = vpop.f32.mrf.mxu0
    %v269 = vadd.f32 %v228, %v268
    %270 = vmatmul.bf16.gmra.mxu0 %v255
    %v271 = vpop.f32.mrf.mxu0
    %v272 = vadd.f32 %v233, %v271
    %v273 = vpop.f32.mrf.mxu0
    %v274 = vadd.f32 %v238, %v273
    %275 = vdwg.mxu0
    %276 = vmatpush.bf16.msra.mxu0 0
    %277 = vmatpush.bf16.msra.mxu0 0
    %278 = vmatpush.bf16.msra.mxu0 0
    %279 = vmatpush.bf16.msra.mxu0 0
    %280 = vmatpush.bf16.msra.mxu0 %v215
    %281 = vmatpush.bf16.msra.mxu0 %v213
    %282 = vmatpush.bf16.msra.mxu0 %v211
    %283 = vmatpush.bf16.msra.mxu0 %v209
    %284 = vmatmul.bf16.gmra.mxu0 %v252
    %v285 = vpop.f32.mrf.mxu0
    %v286 = vadd.f32 %v223, %v285
    %v287 = vpop.f32.mrf.mxu0
    %v288 = vadd.f32 %v228, %v287
    %289 = vmatmul.bf16.gmra.mxu0 %v255
    %v290 = vpop.f32.mrf.mxu0
    %v291 = vadd.f32 %v233, %v290
    %v292 = vpop.f32.mrf.mxu0
    %v293 = vadd.f32 %v238, %v292
    %294 = vdwg.mxu0
    %v295 = vmax.f32 %v267, 0.0
    %v296 = vmax.f32 %v286, 0.0
    %v297 = vmax.f32 %v269, 0.0
    %v298 = vmax.f32 %v288, 0.0
    %v299 = vmax.f32 %v272, 0.0
    %v300 = vmax.f32 %v291, 0.0
    %v301 = vmax.f32 %v274, 0.0
    %v302 = vmax.f32 %v293, 0.0
    %v303 = vld [vmem:[%s5] sm:$0x3]
    %v304 = vpack.c.bf16 %v297, %v295
    %v305 = vpack.c.bf16 %v298, %v296
    %v306 = vpack.c.bf16 %v301, %v299
    %v307 = vpack.c.bf16 %v302, %v300
    %v308 = vld [vmem:[%s6] sm:$0xf]
    %310 = vset.pattern.permute.xlu0 0
    %311 = vperm.xlu0 %310, %v308
    %v312 = vpop.permute.xlu0 %311
    %vm314 = vcmask 261120
    %v316 = vsel %vm314, %v303, 0
    %318 = vmatpush.bf16.msra.mxu0 0
    %319 = vmatpush.bf16.msra.mxu0 0
    %320 = vmatpush.bf16.msra.mxu0 0
    %321 = vmatpush.bf16.msra.mxu0 0
    %322 = vmatpush.bf16.msra.mxu0 0
    %323 = vmatpush.bf16.msra.mxu0 0
    %324 = vmatpush.bf16.msra.mxu0 %v306
    %325 = vmatpush.bf16.msra.mxu0 %v304
    %326 = vmatmul.bf16.gmra.mxu0 %v316
    %v327 = vpop.f32.mrf.mxu0
    %v328 = vadd.f32 %v312, %v327
    %v329 = vpop.f32.mrf.mxu0
    %330 = vdwg.mxu0
    %331 = vmatpush.bf16.msra.mxu0 0
    %332 = vmatpush.bf16.msra.mxu0 0
    %333 = vmatpush.bf16.msra.mxu0 0
    %334 = vmatpush.bf16.msra.mxu0 0
    %335 = vmatpush.bf16.msra.mxu0 0
    %336 = vmatpush.bf16.msra.mxu0 0
    %337 = vmatpush.bf16.msra.mxu0 %v307
    %338 = vmatpush.bf16.msra.mxu0 %v305
    %339 = vmatmul.bf16.gmra.mxu0 %v316
    %v340 = vpop.f32.mrf.mxu0
    %v341 = vadd.f32 %v312, %v340
    %v342 = vpop.f32.mrf.mxu0
    %343 = vdwg.mxu0
    %v346 = vrot.slane %v341, 4
    %v347 = vsel %vm123, %v328, %v346
    %349 = vst [vmem:[#allocation2] sm:$0xff] %v347
    // Predicated region
    $region30: #{tpu_custom_call.1} parent=1 // pred_check
      _
    $region31: #{tpu_custom_call.1} parent=1 // pred_check_branch
      %351 = sbr.rel (0) target = $region33
    $region32: #{tpu_custom_call.1} parent=1 // pred_region
      %353 = vsyncadd [#allocation3], 0
      %s355 = sshll.u32 [#allocation2], 4
      %s356 = int_to_ptr.vmem [resolvable:$true] %s355
      %s357 = sshll.u32 %s7, 4
      %s358 = int_to_ptr.hbm [resolvable:$true] %s357
      %360 = dma.vmem_to_hbm [thread:$0]  %s356, 128, %s358, [#allocation3]
    $region33: #{tpu_custom_call.1} parent=1 // pred_fallthru
      _
    // Predicated region
    $region34: #{tpu_custom_call.1} parent=1 // pred_check
      _
    $region35: #{tpu_custom_call.1} parent=1 // pred_check_branch
      %362 = sbr.rel (0) target = $region37
    $region36: #{tpu_custom_call.1} parent=1 // pred_region
      %364 = dma.done [#allocation3], 128
    $region37: #{tpu_custom_call.1} parent=1 // pred_fallthru
      _
    %365 = vsyncpa [#allocation3], 1

</llo_original>
